<compile_context>
chip_gen: v5e
topology: v5e:2x2
jax: 0.10.0
libtpu: 0.0.40
codegen_flags: <defaults>
</compile_context>

<pallas_src>
import jax
import jax.numpy as jnp
from jax.experimental import pallas as pl
from jax.experimental.pallas import tpu as pltpu

# Network dims: Linear(2,6) -> Tanh -> Linear(6,6) -> Tanh -> Linear(6,2)
D_IN, D_H, D_OUT = 2, 6, 2

# Flat packed-parameter layout (row-major [in, out] per weight matrix).
OFF_W1 = 0
OFF_B1 = OFF_W1 + D_IN * D_H        # 12
OFF_W2 = OFF_B1 + D_H               # 18
OFF_B2 = OFF_W2 + D_H * D_H         # 54
OFF_W3 = OFF_B2 + D_H               # 60
OFF_B3 = OFF_W3 + D_H * D_OUT       # 72
PARAM_LEN = OFF_B3 + D_OUT          # 74
PARAM_PAD = 128                     # flat f32[128] SMEM slab


def _round_up(x, m):
    return ((x + m - 1) // m) * m


def _vpu_layer(p_ref, rows_in, n_in, n_out, w_off, b_off, apply_tanh):
    """One Linear layer as scalar-broadcast FMAs over the lane (batch) dim.

    rows_in: list of [1, TILE_N] f32 arrays, one per input feature.
    Weight/bias scalars come from the SMEM param slab; vector work is pure VPU
    (plus EUP for tanh). No MXU, no masked narrow stores.
    """
    rows_out = []
    for j in range(n_out):
        acc = rows_in[0] * p_ref[w_off + 0 * n_out + j]
        for k in range(1, n_in):
            acc = acc + rows_in[k] * p_ref[w_off + k * n_out + j]
        acc = acc + p_ref[b_off + j]
        rows_out.append(jnp.tanh(acc) if apply_tanh else acc)
    return rows_out


def odefunc_kernel(p_ref, x_ref, o_ref):
    # p_ref: f32[128] in SMEM (packed weights+biases)
    # x_ref: f32[D_IN,  TILE_N]  (features x batch; batch along lanes)
    # o_ref: f32[D_OUT, TILE_N]
    x_rows = [x_ref[k:k + 1, :] for k in range(D_IN)]
    h1 = _vpu_layer(p_ref, x_rows, D_IN, D_H, OFF_W1, OFF_B1, True)
    h2 = _vpu_layer(p_ref, h1, D_H, D_H, OFF_W2, OFF_B2, True)
    out = _vpu_layer(p_ref, h2, D_H, D_OUT, OFF_W3, OFF_B3, False)
    for j in range(D_OUT):
        o_ref[j:j + 1, :] = out[j]   # lane-dense (TILE_N-wide) stores


def pack_params(w1, b1, w2, b2, w3, b3):
    """Pack all parameters into one flat f32[PARAM_PAD] vector for SMEM."""
    flat = jnp.concatenate([
        w1.reshape(-1), b1.reshape(-1),
        w2.reshape(-1), b2.reshape(-1),
        w3.reshape(-1), b3.reshape(-1),
    ]).astype(jnp.float32)
    return jnp.pad(flat, (0, PARAM_PAD - PARAM_LEN))


def odefunc_forward(t, x, packed_params, *, max_tile_n=2048):
    """Equivalent of ODEFunc.forward(t, x): t ignored, returns net(x).

    x: [N, 2] f32 (PyTorch convention).  Internally transposed to a
    lane-dense [2, N_padded] layout, tiled over batch with a parallel grid.
    """
    del t  # unused, exactly as in the PyTorch module
    n = x.shape[0]
    tile = min(max_tile_n, _round_up(max(n, 1), 128))
    n_pad = _round_up(max(n, 1), tile)

    # Layout plumbing: [N,2] -> zero-padded [2, n_pad] (batch along lanes).
    xt = jnp.zeros((D_IN, n_pad), jnp.float32).at[:, :n].set(
        x.astype(jnp.float32).T)

    out_t = pl.pallas_call(
        odefunc_kernel,
        out_shape=jax.ShapeDtypeStruct((D_OUT, n_pad), jnp.float32),
        grid=(n_pad // tile,),
        in_specs=[
            pl.BlockSpec(memory_space=pltpu.MemorySpace.SMEM),      # params
            pl.BlockSpec((D_IN, tile), lambda i: (0, i)),           # x tile
        ],
        out_specs=pl.BlockSpec((D_OUT, tile), lambda i: (0, i)),
        compiler_params=pltpu.CompilerParams(
            dimension_semantics=("parallel",)),                     # 2 TCs on v7x
    )(packed_params, xt)

    return out_t[:, :n].T                                           # [N, 2]


def init_params(key):
    """Deterministic init mirroring nn.Linear (stored transposed: [in, out])."""
    dims = [(2, 6), (6, 6), (6, 2)]
    params = []
    for (fan_in, fan_out) in dims:
        key, kw, kb = jax.random.split(key, 3)
        bound = 1.0 / jnp.sqrt(jnp.float32(fan_in))
        w = jax.random.uniform(kw, (fan_in, fan_out), jnp.float32, -bound, bound)
        b = jax.random.uniform(kb, (fan_out,), jnp.float32, -bound, bound)
        params += [w, b]
    return tuple(params)


if __name__ == "__main__":
    key = jax.random.PRNGKey(0)
    kx, kp = jax.random.split(key)

    batch = 8
    x = jax.random.normal(kx, (batch, 2), jnp.float32)   # ODE state: [N, 2]
    t = jnp.float32(0.0)                                  # ignored by forward

    w1, b1, w2, b2, w3, b3 = init_params(kp)
    packed = pack_params(w1, b1, w2, b2, w3, b3)

    out = odefunc_forward(t, x, packed)
    jax.block_until_ready(out)

    # Cross-check against a plain-JAX reference of the same MLP.
    ref = jnp.tanh(x @ w1 + b1[None, :])
    ref = jnp.tanh(ref @ w2 + b2[None, :])
    ref = ref @ w3 + b3[None, :]
    assert out.shape == (batch, 2)
    assert jnp.allclose(out, ref, atol=1e-5, rtol=1e-5)

    print("KERNEL_OK")
</pallas_src>

<mosaic_0001>
module attributes {stable_mosaic.version = 11 : i64} {
  func.func @odefunc_kernel(%arg0: i32, %arg1: memref<128xf32, #tpu.memory_space<smem>>, %arg2: memref<2x128xf32, #tpu.memory_space<vmem>>, %arg3: memref<2x128xf32, #tpu.memory_space<vmem>>) attributes {dimension_semantics = [#tpu.dimension_semantics<parallel>], iteration_bounds = array<i64: 1>, scalar_prefetch = 0 : i64, scratch_operands = 0 : i64, tpu.core_type = #tpu.core_type<tc>, window_params = [{transform_indices = @transform_0, window_bounds = array<i64: 128>}, {transform_indices = @transform_1, window_bounds = array<i64: 2, 128>}, {transform_indices = @transform_2, window_bounds = array<i64: 2, 128>}]} {
    %c0 = arith.constant 0 : index
    %c0_0 = arith.constant 0 : index
    %0 = vector.load %arg2[%c0, %c0_0] : memref<2x128xf32, #tpu.memory_space<vmem>>, vector<1x128xf32>
    %c1 = arith.constant 1 : index
    %c0_1 = arith.constant 0 : index
    %1 = vector.load %arg2[%c1, %c0_1] : memref<2x128xf32, #tpu.memory_space<vmem>>, vector<1x128xf32>
    %c0_2 = arith.constant 0 : index
    %2 = memref.load %arg1[%c0_2] : memref<128xf32, #tpu.memory_space<smem>>
    %3 = vector.broadcast %2 : f32 to vector<1x128xf32>
    %4 = arith.mulf %0, %3 : vector<1x128xf32>
    %c6 = arith.constant 6 : index
    %5 = memref.load %arg1[%c6] : memref<128xf32, #tpu.memory_space<smem>>
    %6 = vector.broadcast %5 : f32 to vector<1x128xf32>
    %7 = arith.mulf %1, %6 : vector<1x128xf32>
    %8 = arith.addf %4, %7 : vector<1x128xf32>
    %c12 = arith.constant 12 : index
    %9 = memref.load %arg1[%c12] : memref<128xf32, #tpu.memory_space<smem>>
    %10 = vector.broadcast %9 : f32 to vector<1x128xf32>
    %11 = arith.addf %8, %10 : vector<1x128xf32>
    %12 = math.tanh %11 : vector<1x128xf32>
    %c1_3 = arith.constant 1 : index
    %13 = memref.load %arg1[%c1_3] : memref<128xf32, #tpu.memory_space<smem>>
    %14 = vector.broadcast %13 : f32 to vector<1x128xf32>
    %15 = arith.mulf %0, %14 : vector<1x128xf32>
    %c7 = arith.constant 7 : index
    %16 = memref.load %arg1[%c7] : memref<128xf32, #tpu.memory_space<smem>>
    %17 = vector.broadcast %16 : f32 to vector<1x128xf32>
    %18 = arith.mulf %1, %17 : vector<1x128xf32>
    %19 = arith.addf %15, %18 : vector<1x128xf32>
    %c13 = arith.constant 13 : index
    %20 = memref.load %arg1[%c13] : memref<128xf32, #tpu.memory_space<smem>>
    %21 = vector.broadcast %20 : f32 to vector<1x128xf32>
    %22 = arith.addf %19, %21 : vector<1x128xf32>
    %23 = math.tanh %22 : vector<1x128xf32>
    %c2 = arith.constant 2 : index
    %24 = memref.load %arg1[%c2] : memref<128xf32, #tpu.memory_space<smem>>
    %25 = vector.broadcast %24 : f32 to vector<1x128xf32>
    %26 = arith.mulf %0, %25 : vector<1x128xf32>
    %c8 = arith.constant 8 : index
    %27 = memref.load %arg1[%c8] : memref<128xf32, #tpu.memory_space<smem>>
    %28 = vector.broadcast %27 : f32 to vector<1x128xf32>
    %29 = arith.mulf %1, %28 : vector<1x128xf32>
    %30 = arith.addf %26, %29 : vector<1x128xf32>
    %c14 = arith.constant 14 : index
    %31 = memref.load %arg1[%c14] : memref<128xf32, #tpu.memory_space<smem>>
    %32 = vector.broadcast %31 : f32 to vector<1x128xf32>
    %33 = arith.addf %30, %32 : vector<1x128xf32>
    %34 = math.tanh %33 : vector<1x128xf32>
    %c3 = arith.constant 3 : index
    %35 = memref.load %arg1[%c3] : memref<128xf32, #tpu.memory_space<smem>>
    %36 = vector.broadcast %35 : f32 to vector<1x128xf32>
    %37 = arith.mulf %0, %36 : vector<1x128xf32>
    %c9 = arith.constant 9 : index
    %38 = memref.load %arg1[%c9] : memref<128xf32, #tpu.memory_space<smem>>
    %39 = vector.broadcast %38 : f32 to vector<1x128xf32>
    %40 = arith.mulf %1, %39 : vector<1x128xf32>
    %41 = arith.addf %37, %40 : vector<1x128xf32>
    %c15 = arith.constant 15 : index
    %42 = memref.load %arg1[%c15] : memref<128xf32, #tpu.memory_space<smem>>
    %43 = vector.broadcast %42 : f32 to vector<1x128xf32>
    %44 = arith.addf %41, %43 : vector<1x128xf32>
    %45 = math.tanh %44 : vector<1x128xf32>
    %c4 = arith.constant 4 : index
    %46 = memref.load %arg1[%c4] : memref<128xf32, #tpu.memory_space<smem>>
    %47 = vector.broadcast %46 : f32 to vector<1x128xf32>
    %48 = arith.mulf %0, %47 : vector<1x128xf32>
    %c10 = arith.constant 10 : index
    %49 = memref.load %arg1[%c10] : memref<128xf32, #tpu.memory_space<smem>>
    %50 = vector.broadcast %49 : f32 to vector<1x128xf32>
    %51 = arith.mulf %1, %50 : vector<1x128xf32>
    %52 = arith.addf %48, %51 : vector<1x128xf32>
    %c16 = arith.constant 16 : index
    %53 = memref.load %arg1[%c16] : memref<128xf32, #tpu.memory_space<smem>>
    %54 = vector.broadcast %53 : f32 to vector<1x128xf32>
    %55 = arith.addf %52, %54 : vector<1x128xf32>
    %56 = math.tanh %55 : vector<1x128xf32>
    %c5 = arith.constant 5 : index
    %57 = memref.load %arg1[%c5] : memref<128xf32, #tpu.memory_space<smem>>
    %58 = vector.broadcast %57 : f32 to vector<1x128xf32>
    %59 = arith.mulf %0, %58 : vector<1x128xf32>
    %c11 = arith.constant 11 : index
    %60 = memref.load %arg1[%c11] : memref<128xf32, #tpu.memory_space<smem>>
    %61 = vector.broadcast %60 : f32 to vector<1x128xf32>
    %62 = arith.mulf %1, %61 : vector<1x128xf32>
    %63 = arith.addf %59, %62 : vector<1x128xf32>
    %c17 = arith.constant 17 : index
    %64 = memref.load %arg1[%c17] : memref<128xf32, #tpu.memory_space<smem>>
    %65 = vector.broadcast %64 : f32 to vector<1x128xf32>
    %66 = arith.addf %63, %65 : vector<1x128xf32>
    %67 = math.tanh %66 : vector<1x128xf32>
    %c18 = arith.constant 18 : index
    %68 = memref.load %arg1[%c18] : memref<128xf32, #tpu.memory_space<smem>>
    %69 = vector.broadcast %68 : f32 to vector<1x128xf32>
    %70 = arith.mulf %12, %69 : vector<1x128xf32>
    %c24 = arith.constant 24 : index
    %71 = memref.load %arg1[%c24] : memref<128xf32, #tpu.memory_space<smem>>
    %72 = vector.broadcast %71 : f32 to vector<1x128xf32>
    %73 = arith.mulf %23, %72 : vector<1x128xf32>
    %74 = arith.addf %70, %73 : vector<1x128xf32>
    %c30 = arith.constant 30 : index
    %75 = memref.load %arg1[%c30] : memref<128xf32, #tpu.memory_space<smem>>
    %76 = vector.broadcast %75 : f32 to vector<1x128xf32>
    %77 = arith.mulf %34, %76 : vector<1x128xf32>
    %78 = arith.addf %74, %77 : vector<1x128xf32>
    %c36 = arith.constant 36 : index
    %79 = memref.load %arg1[%c36] : memref<128xf32, #tpu.memory_space<smem>>
    %80 = vector.broadcast %79 : f32 to vector<1x128xf32>
    %81 = arith.mulf %45, %80 : vector<1x128xf32>
    %82 = arith.addf %78, %81 : vector<1x128xf32>
    %c42 = arith.constant 42 : index
    %83 = memref.load %arg1[%c42] : memref<128xf32, #tpu.memory_space<smem>>
    %84 = vector.broadcast %83 : f32 to vector<1x128xf32>
    %85 = arith.mulf %56, %84 : vector<1x128xf32>
    %86 = arith.addf %82, %85 : vector<1x128xf32>
    %c48 = arith.constant 48 : index
    %87 = memref.load %arg1[%c48] : memref<128xf32, #tpu.memory_space<smem>>
    %88 = vector.broadcast %87 : f32 to vector<1x128xf32>
    %89 = arith.mulf %67, %88 : vector<1x128xf32>
    %90 = arith.addf %86, %89 : vector<1x128xf32>
    %c54 = arith.constant 54 : index
    %91 = memref.load %arg1[%c54] : memref<128xf32, #tpu.memory_space<smem>>
    %92 = vector.broadcast %91 : f32 to vector<1x128xf32>
    %93 = arith.addf %90, %92 : vector<1x128xf32>
    %94 = math.tanh %93 : vector<1x128xf32>
    %c19 = arith.constant 19 : index
    %95 = memref.load %arg1[%c19] : memref<128xf32, #tpu.memory_space<smem>>
    %96 = vector.broadcast %95 : f32 to vector<1x128xf32>
    %97 = arith.mulf %12, %96 : vector<1x128xf32>
    %c25 = arith.constant 25 : index
    %98 = memref.load %arg1[%c25] : memref<128xf32, #tpu.memory_space<smem>>
    %99 = vector.broadcast %98 : f32 to vector<1x128xf32>
    %100 = arith.mulf %23, %99 : vector<1x128xf32>
    %101 = arith.addf %97, %100 : vector<1x128xf32>
    %c31 = arith.constant 31 : index
    %102 = memref.load %arg1[%c31] : memref<128xf32, #tpu.memory_space<smem>>
    %103 = vector.broadcast %102 : f32 to vector<1x128xf32>
    %104 = arith.mulf %34, %103 : vector<1x128xf32>
    %105 = arith.addf %101, %104 : vector<1x128xf32>
    %c37 = arith.constant 37 : index
    %106 = memref.load %arg1[%c37] : memref<128xf32, #tpu.memory_space<smem>>
    %107 = vector.broadcast %106 : f32 to vector<1x128xf32>
    %108 = arith.mulf %45, %107 : vector<1x128xf32>
    %109 = arith.addf %105, %108 : vector<1x128xf32>
    %c43 = arith.constant 43 : index
    %110 = memref.load %arg1[%c43] : memref<128xf32, #tpu.memory_space<smem>>
    %111 = vector.broadcast %110 : f32 to vector<1x128xf32>
    %112 = arith.mulf %56, %111 : vector<1x128xf32>
    %113 = arith.addf %109, %112 : vector<1x128xf32>
    %c49 = arith.constant 49 : index
    %114 = memref.load %arg1[%c49] : memref<128xf32, #tpu.memory_space<smem>>
    %115 = vector.broadcast %114 : f32 to vector<1x128xf32>
    %116 = arith.mulf %67, %115 : vector<1x128xf32>
    %117 = arith.addf %113, %116 : vector<1x128xf32>
    %c55 = arith.constant 55 : index
    %118 = memref.load %arg1[%c55] : memref<128xf32, #tpu.memory_space<smem>>
    %119 = vector.broadcast %118 : f32 to vector<1x128xf32>
    %120 = arith.addf %117, %119 : vector<1x128xf32>
    %121 = math.tanh %120 : vector<1x128xf32>
    %c20 = arith.constant 20 : index
    %122 = memref.load %arg1[%c20] : memref<128xf32, #tpu.memory_space<smem>>
    %123 = vector.broadcast %122 : f32 to vector<1x128xf32>
    %124 = arith.mulf %12, %123 : vector<1x128xf32>
    %c26 = arith.constant 26 : index
    %125 = memref.load %arg1[%c26] : memref<128xf32, #tpu.memory_space<smem>>
    %126 = vector.broadcast %125 : f32 to vector<1x128xf32>
    %127 = arith.mulf %23, %126 : vector<1x128xf32>
    %128 = arith.addf %124, %127 : vector<1x128xf32>
    %c32 = arith.constant 32 : index
    %129 = memref.load %arg1[%c32] : memref<128xf32, #tpu.memory_space<smem>>
    %130 = vector.broadcast %129 : f32 to vector<1x128xf32>
    %131 = arith.mulf %34, %130 : vector<1x128xf32>
    %132 = arith.addf %128, %131 : vector<1x128xf32>
    %c38 = arith.constant 38 : index
    %133 = memref.load %arg1[%c38] : memref<128xf32, #tpu.memory_space<smem>>
    %134 = vector.broadcast %133 : f32 to vector<1x128xf32>
    %135 = arith.mulf %45, %134 : vector<1x128xf32>
    %136 = arith.addf %132, %135 : vector<1x128xf32>
    %c44 = arith.constant 44 : index
    %137 = memref.load %arg1[%c44] : memref<128xf32, #tpu.memory_space<smem>>
    %138 = vector.broadcast %137 : f32 to vector<1x128xf32>
    %139 = arith.mulf %56, %138 : vector<1x128xf32>
    %140 = arith.addf %136, %139 : vector<1x128xf32>
    %c50 = arith.constant 50 : index
    %141 = memref.load %arg1[%c50] : memref<128xf32, #tpu.memory_space<smem>>
    %142 = vector.broadcast %141 : f32 to vector<1x128xf32>
    %143 = arith.mulf %67, %142 : vector<1x128xf32>
    %144 = arith.addf %140, %143 : vector<1x128xf32>
    %c56 = arith.constant 56 : index
    %145 = memref.load %arg1[%c56] : memref<128xf32, #tpu.memory_space<smem>>
    %146 = vector.broadcast %145 : f32 to vector<1x128xf32>
    %147 = arith.addf %144, %146 : vector<1x128xf32>
    %148 = math.tanh %147 : vector<1x128xf32>
    %c21 = arith.constant 21 : index
    %149 = memref.load %arg1[%c21] : memref<128xf32, #tpu.memory_space<smem>>
    %150 = vector.broadcast %149 : f32 to vector<1x128xf32>
    %151 = arith.mulf %12, %150 : vector<1x128xf32>
    %c27 = arith.constant 27 : index
    %152 = memref.load %arg1[%c27] : memref<128xf32, #tpu.memory_space<smem>>
    %153 = vector.broadcast %152 : f32 to vector<1x128xf32>
    %154 = arith.mulf %23, %153 : vector<1x128xf32>
    %155 = arith.addf %151, %154 : vector<1x128xf32>
    %c33 = arith.constant 33 : index
    %156 = memref.load %arg1[%c33] : memref<128xf32, #tpu.memory_space<smem>>
    %157 = vector.broadcast %156 : f32 to vector<1x128xf32>
    %158 = arith.mulf %34, %157 : vector<1x128xf32>
    %159 = arith.addf %155, %158 : vector<1x128xf32>
    %c39 = arith.constant 39 : index
    %160 = memref.load %arg1[%c39] : memref<128xf32, #tpu.memory_space<smem>>
    %161 = vector.broadcast %160 : f32 to vector<1x128xf32>
    %162 = arith.mulf %45, %161 : vector<1x128xf32>
    %163 = arith.addf %159, %162 : vector<1x128xf32>
    %c45 = arith.constant 45 : index
    %164 = memref.load %arg1[%c45] : memref<128xf32, #tpu.memory_space<smem>>
    %165 = vector.broadcast %164 : f32 to vector<1x128xf32>
    %166 = arith.mulf %56, %165 : vector<1x128xf32>
    %167 = arith.addf %163, %166 : vector<1x128xf32>
    %c51 = arith.constant 51 : index
    %168 = memref.load %arg1[%c51] : memref<128xf32, #tpu.memory_space<smem>>
    %169 = vector.broadcast %168 : f32 to vector<1x128xf32>
    %170 = arith.mulf %67, %169 : vector<1x128xf32>
    %171 = arith.addf %167, %170 : vector<1x128xf32>
    %c57 = arith.constant 57 : index
    %172 = memref.load %arg1[%c57] : memref<128xf32, #tpu.memory_space<smem>>
    %173 = vector.broadcast %172 : f32 to vector<1x128xf32>
    %174 = arith.addf %171, %173 : vector<1x128xf32>
    %175 = math.tanh %174 : vector<1x128xf32>
    %c22 = arith.constant 22 : index
    %176 = memref.load %arg1[%c22] : memref<128xf32, #tpu.memory_space<smem>>
    %177 = vector.broadcast %176 : f32 to vector<1x128xf32>
    %178 = arith.mulf %12, %177 : vector<1x128xf32>
    %c28 = arith.constant 28 : index
    %179 = memref.load %arg1[%c28] : memref<128xf32, #tpu.memory_space<smem>>
    %180 = vector.broadcast %179 : f32 to vector<1x128xf32>
    %181 = arith.mulf %23, %180 : vector<1x128xf32>
    %182 = arith.addf %178, %181 : vector<1x128xf32>
    %c34 = arith.constant 34 : index
    %183 = memref.load %arg1[%c34] : memref<128xf32, #tpu.memory_space<smem>>
    %184 = vector.broadcast %183 : f32 to vector<1x128xf32>
    %185 = arith.mulf %34, %184 : vector<1x128xf32>
    %186 = arith.addf %182, %185 : vector<1x128xf32>
    %c40 = arith.constant 40 : index
    %187 = memref.load %arg1[%c40] : memref<128xf32, #tpu.memory_space<smem>>
    %188 = vector.broadcast %187 : f32 to vector<1x128xf32>
    %189 = arith.mulf %45, %188 : vector<1x128xf32>
    %190 = arith.addf %186, %189 : vector<1x128xf32>
    %c46 = arith.constant 46 : index
    %191 = memref.load %arg1[%c46] : memref<128xf32, #tpu.memory_space<smem>>
    %192 = vector.broadcast %191 : f32 to vector<1x128xf32>
    %193 = arith.mulf %56, %192 : vector<1x128xf32>
    %194 = arith.addf %190, %193 : vector<1x128xf32>
    %c52 = arith.constant 52 : index
    %195 = memref.load %arg1[%c52] : memref<128xf32, #tpu.memory_space<smem>>
    %196 = vector.broadcast %195 : f32 to vector<1x128xf32>
    %197 = arith.mulf %67, %196 : vector<1x128xf32>
    %198 = arith.addf %194, %197 : vector<1x128xf32>
    %c58 = arith.constant 58 : index
    %199 = memref.load %arg1[%c58] : memref<128xf32, #tpu.memory_space<smem>>
    %200 = vector.broadcast %199 : f32 to vector<1x128xf32>
    %201 = arith.addf %198, %200 : vector<1x128xf32>
    %202 = math.tanh %201 : vector<1x128xf32>
    %c23 = arith.constant 23 : index
    %203 = memref.load %arg1[%c23] : memref<128xf32, #tpu.memory_space<smem>>
    %204 = vector.broadcast %203 : f32 to vector<1x128xf32>
    %205 = arith.mulf %12, %204 : vector<1x128xf32>
    %c29 = arith.constant 29 : index
    %206 = memref.load %arg1[%c29] : memref<128xf32, #tpu.memory_space<smem>>
    %207 = vector.broadcast %206 : f32 to vector<1x128xf32>
    %208 = arith.mulf %23, %207 : vector<1x128xf32>
    %209 = arith.addf %205, %208 : vector<1x128xf32>
    %c35 = arith.constant 35 : index
    %210 = memref.load %arg1[%c35] : memref<128xf32, #tpu.memory_space<smem>>
    %211 = vector.broadcast %210 : f32 to vector<1x128xf32>
    %212 = arith.mulf %34, %211 : vector<1x128xf32>
    %213 = arith.addf %209, %212 : vector<1x128xf32>
    %c41 = arith.constant 41 : index
    %214 = memref.load %arg1[%c41] : memref<128xf32, #tpu.memory_space<smem>>
    %215 = vector.broadcast %214 : f32 to vector<1x128xf32>
    %216 = arith.mulf %45, %215 : vector<1x128xf32>
    %217 = arith.addf %213, %216 : vector<1x128xf32>
    %c47 = arith.constant 47 : index
    %218 = memref.load %arg1[%c47] : memref<128xf32, #tpu.memory_space<smem>>
    %219 = vector.broadcast %218 : f32 to vector<1x128xf32>
    %220 = arith.mulf %56, %219 : vector<1x128xf32>
    %221 = arith.addf %217, %220 : vector<1x128xf32>
    %c53 = arith.constant 53 : index
    %222 = memref.load %arg1[%c53] : memref<128xf32, #tpu.memory_space<smem>>
    %223 = vector.broadcast %222 : f32 to vector<1x128xf32>
    %224 = arith.mulf %67, %223 : vector<1x128xf32>
    %225 = arith.addf %221, %224 : vector<1x128xf32>
    %c59 = arith.constant 59 : index
    %226 = memref.load %arg1[%c59] : memref<128xf32, #tpu.memory_space<smem>>
    %227 = vector.broadcast %226 : f32 to vector<1x128xf32>
    %228 = arith.addf %225, %227 : vector<1x128xf32>
    %229 = math.tanh %228 : vector<1x128xf32>
    %c60 = arith.constant 60 : index
    %230 = memref.load %arg1[%c60] : memref<128xf32, #tpu.memory_space<smem>>
    %231 = vector.broadcast %230 : f32 to vector<1x128xf32>
    %232 = arith.mulf %94, %231 : vector<1x128xf32>
    %c62 = arith.constant 62 : index
    %233 = memref.load %arg1[%c62] : memref<128xf32, #tpu.memory_space<smem>>
    %234 = vector.broadcast %233 : f32 to vector<1x128xf32>
    %235 = arith.mulf %121, %234 : vector<1x128xf32>
    %236 = arith.addf %232, %235 : vector<1x128xf32>
    %c64 = arith.constant 64 : index
    %237 = memref.load %arg1[%c64] : memref<128xf32, #tpu.memory_space<smem>>
    %238 = vector.broadcast %237 : f32 to vector<1x128xf32>
    %239 = arith.mulf %148, %238 : vector<1x128xf32>
    %240 = arith.addf %236, %239 : vector<1x128xf32>
    %c66 = arith.constant 66 : index
    %241 = memref.load %arg1[%c66] : memref<128xf32, #tpu.memory_space<smem>>
    %242 = vector.broadcast %241 : f32 to vector<1x128xf32>
    %243 = arith.mulf %175, %242 : vector<1x128xf32>
    %244 = arith.addf %240, %243 : vector<1x128xf32>
    %c68 = arith.constant 68 : index
    %245 = memref.load %arg1[%c68] : memref<128xf32, #tpu.memory_space<smem>>
    %246 = vector.broadcast %245 : f32 to vector<1x128xf32>
    %247 = arith.mulf %202, %246 : vector<1x128xf32>
    %248 = arith.addf %244, %247 : vector<1x128xf32>
    %c70 = arith.constant 70 : index
    %249 = memref.load %arg1[%c70] : memref<128xf32, #tpu.memory_space<smem>>
    %250 = vector.broadcast %249 : f32 to vector<1x128xf32>
    %251 = arith.mulf %229, %250 : vector<1x128xf32>
    %252 = arith.addf %248, %251 : vector<1x128xf32>
    %c72 = arith.constant 72 : index
    %253 = memref.load %arg1[%c72] : memref<128xf32, #tpu.memory_space<smem>>
    %254 = vector.broadcast %253 : f32 to vector<1x128xf32>
    %255 = arith.addf %252, %254 : vector<1x128xf32>
    %c61 = arith.constant 61 : index
    %256 = memref.load %arg1[%c61] : memref<128xf32, #tpu.memory_space<smem>>
    %257 = vector.broadcast %256 : f32 to vector<1x128xf32>
    %258 = arith.mulf %94, %257 : vector<1x128xf32>
    %c63 = arith.constant 63 : index
    %259 = memref.load %arg1[%c63] : memref<128xf32, #tpu.memory_space<smem>>
    %260 = vector.broadcast %259 : f32 to vector<1x128xf32>
    %261 = arith.mulf %121, %260 : vector<1x128xf32>
    %262 = arith.addf %258, %261 : vector<1x128xf32>
    %c65 = arith.constant 65 : index
    %263 = memref.load %arg1[%c65] : memref<128xf32, #tpu.memory_space<smem>>
    %264 = vector.broadcast %263 : f32 to vector<1x128xf32>
    %265 = arith.mulf %148, %264 : vector<1x128xf32>
    %266 = arith.addf %262, %265 : vector<1x128xf32>
    %c67 = arith.constant 67 : index
    %267 = memref.load %arg1[%c67] : memref<128xf32, #tpu.memory_space<smem>>
    %268 = vector.broadcast %267 : f32 to vector<1x128xf32>
    %269 = arith.mulf %175, %268 : vector<1x128xf32>
    %270 = arith.addf %266, %269 : vector<1x128xf32>
    %c69 = arith.constant 69 : index
    %271 = memref.load %arg1[%c69] : memref<128xf32, #tpu.memory_space<smem>>
    %272 = vector.broadcast %271 : f32 to vector<1x128xf32>
    %273 = arith.mulf %202, %272 : vector<1x128xf32>
    %274 = arith.addf %270, %273 : vector<1x128xf32>
    %c71 = arith.constant 71 : index
    %275 = memref.load %arg1[%c71] : memref<128xf32, #tpu.memory_space<smem>>
    %276 = vector.broadcast %275 : f32 to vector<1x128xf32>
    %277 = arith.mulf %229, %276 : vector<1x128xf32>
    %278 = arith.addf %274, %277 : vector<1x128xf32>
    %c73 = arith.constant 73 : index
    %279 = memref.load %arg1[%c73] : memref<128xf32, #tpu.memory_space<smem>>
    %280 = vector.broadcast %279 : f32 to vector<1x128xf32>
    %281 = arith.addf %278, %280 : vector<1x128xf32>
    %c0_4 = arith.constant 0 : index
    %c0_5 = arith.constant 0 : index
    %282 = vector.load %arg3[%c0_4, %c0_5] : memref<2x128xf32, #tpu.memory_space<vmem>>, vector<1x128xf32>
    tpu.vector_store %arg3[%c0_4, %c0_5], %255 {strides = array<i32>} : memref<2x128xf32, #tpu.memory_space<vmem>>, vector<1x128xf32>,
    %c1_6 = arith.constant 1 : index
    %c0_7 = arith.constant 0 : index
    %283 = vector.load %arg3[%c1_6, %c0_7] : memref<2x128xf32, #tpu.memory_space<vmem>>, vector<1x128xf32>
    tpu.vector_store %arg3[%c1_6, %c0_7], %281 {strides = array<i32>} : memref<2x128xf32, #tpu.memory_space<vmem>>, vector<1x128xf32>,
    return
  }
  func.func @transform_0(%arg0: i32) -> i32 {
    %c0_i32 = arith.constant 0 : i32
    %c0_i32_0 = arith.constant 0 : i32
    return %c0_i32 : i32
  }
  func.func @transform_1(%arg0: i32) -> (i32, i32) {
    %c0_i32 = arith.constant 0 : i32
    %c0_i32_0 = arith.constant 0 : i32
    return %c0_i32, %arg0 : i32, i32
  }
  func.func @transform_2(%arg0: i32) -> (i32, i32) {
    %c0_i32 = arith.constant 0 : i32
    %c0_i32_0 = arith.constant 0 : i32
    return %c0_i32, %arg0 : i32, i32
  }
}

</mosaic_0001>

<llo_original>
// kernel: tpu_custom_call.1
$region0: #{tpu_custom_call.1}
  #allocation0 [shape = 'u32[]', space=smem, size = 0x4, offset = 0x4, fixed_abs, tag = 'smem constant byte address 0x4 - core index']
  #allocation1 [shape = 'u32[72,128]{1,0:T(1,128)}', space=vmem, size = 0x9000, scoped, tag = 'internal scratch']
  %s0 = inlined_call_operand.hbm [shape: f32[128], index: 0, kind: input, shape index: {}]
  %s1 = inlined_call_operand.hbm [shape: f32[2,128], index: 1, kind: input, shape index: {}]
  %s2 = inlined_call_operand.hbm [shape: f32[2,128], index: 2, kind: output, shape index: {}]
  %s3 = sld [smem:[#allocation0]]
  $region26: #{tpu_custom_call.1} parent=0
    _
  %s5 = ssub.s32 1, %s3
  %s6 = scalar_select 0, %s5, %s3
  $region1: #{tpu_custom_call.1} parent=0
    #allocation2 [shape = 'u8[512]{0}', space=smem, size = 0x200, scoped, tag = 'input window, operand 0, single buffered']
    #allocation3 [shape = 's32[1]{0}', space=sflag, size = 0x4, scoped, tag = 'scoped memory for tpu_custom_call.1']
    #allocation4 [shape = 's32[1]{0}', space=sflag, size = 0x4, scoped, tag = 'scoped memory for tpu_custom_call.1']
    #allocation5 [shape = 's32[1]{0}', space=sflag, size = 0x4, scoped, tag = 'scoped memory for tpu_custom_call.1']
    #allocation6 [shape = 'u8[1024]{0}', space=vmem, size = 0x400, scoped, tag = 'input window, operand 1, single buffered']
    #allocation7 [shape = 'u8[1024]{0}', space=vmem, size = 0x400, scoped, tag = 'output window, operand 0, single buffered']
    %7 = vsyncpa [#allocation5], 0
    %8 = vsyncpa [#allocation3], 0
    %9 = vsyncpa [#allocation4], 0
    // Predicated region
    $region2: #{tpu_custom_call.1} parent=1 // pred_check
      _
    $region3: #{tpu_custom_call.1} parent=1 // pred_check_branch
      %11 = sbr.rel (0) target = $region5
    $region4: #{tpu_custom_call.1} parent=1 // pred_region
      %13 = vsyncadd [#allocation5], 0
      %s15 = sshll.u32 %s0, 4
      %s16 = int_to_ptr.hbm [resolvable:$true] %s15
      %18 = dma.hbm_to_smem %s16, 16, [#allocation2], [#allocation5]
    $region5: #{tpu_custom_call.1} parent=1 // pred_fallthru
      _
    // Predicated region
    $region6: #{tpu_custom_call.1} parent=1 // pred_check
      _
    $region7: #{tpu_custom_call.1} parent=1 // pred_check_branch
      %20 = sbr.rel (0) target = $region9
    $region8: #{tpu_custom_call.1} parent=1 // pred_region
      %22 = vsyncadd [#allocation3], 0
      %s24 = sshll.u32 %s1, 4
      %s25 = int_to_ptr.hbm [resolvable:$true] %s24
      %s26 = sshll.u32 [#allocation6], 4
      %s27 = int_to_ptr.vmem [resolvable:$true] %s26
      %29 = dma.hbm_to_vmem [thread:$0]  %s25, 32, %s27, [#allocation3]
    $region9: #{tpu_custom_call.1} parent=1 // pred_fallthru
      _
    // Predicated region
    $region10: #{tpu_custom_call.1} parent=1 // pred_check
      _
    $region11: #{tpu_custom_call.1} parent=1 // pred_check_branch
      %31 = sbr.rel (0) target = $region13
    $region12: #{tpu_custom_call.1} parent=1 // pred_region
      %33 = dma.done [#allocation5], 16
    $region13: #{tpu_custom_call.1} parent=1 // pred_fallthru
      _
    // Predicated region
    $region14: #{tpu_custom_call.1} parent=1 // pred_check
      _
    $region15: #{tpu_custom_call.1} parent=1 // pred_check_branch
      %35 = sbr.rel (0) target = $region17
    $region16: #{tpu_custom_call.1} parent=1 // pred_region
      %37 = dma.done [#allocation3], 32
    $region17: #{tpu_custom_call.1} parent=1 // pred_fallthru
      _
    %38 = sfence
    %v39 = vld [vmem:[#allocation6] sm:$0x1]
    %v40 = vld [vmem:[#allocation6 + $0x1] sm:$0x1]
    %s41 = sld [smem:[#allocation2]]
    %v42 = vstv %s41
    %v43 = vmul.f32 %v39, %v42
    %s44 = sld [smem:[#allocation2 + $0x6]]
    %v45 = vstv %s44
    %v46 = vmul.f32 %v40, %v45
    %v47 = vadd.f32 %v43, %v46
    %s48 = sld [smem:[#allocation2 + $0xc]]
    %v49 = vstv %s48
    %v50 = vadd.f32 %v47, %v49
    %v51 = vtanh.pop %v50
    %s52 = sld [smem:[#allocation2 + $0x1]]
    %v53 = vstv %s52
    %v54 = vmul.f32 %v39, %v53
    %s55 = sld [smem:[#allocation2 + $0x7]]
    %v56 = vstv %s55
    %v57 = vmul.f32 %v40, %v56
    %v58 = vadd.f32 %v54, %v57
    %s59 = sld [smem:[#allocation2 + $0xd]]
    %v60 = vstv %s59
    %v61 = vadd.f32 %v58, %v60
    %v62 = vtanh.pop %v61
    %s63 = sld [smem:[#allocation2 + $0x2]]
    %v64 = vstv %s63
    %v65 = vmul.f32 %v39, %v64
    %s66 = sld [smem:[#allocation2 + $0x8]]
    %v67 = vstv %s66
    %v68 = vmul.f32 %v40, %v67
    %v69 = vadd.f32 %v65, %v68
    %s70 = sld [smem:[#allocation2 + $0xe]]
    %v71 = vstv %s70
    %v72 = vadd.f32 %v69, %v71
    %v73 = vtanh.pop %v72
    %s74 = sld [smem:[#allocation2 + $0x3]]
    %v75 = vstv %s74
    %v76 = vmul.f32 %v39, %v75
    %s77 = sld [smem:[#allocation2 + $0x9]]
    %v78 = vstv %s77
    %v79 = vmul.f32 %v40, %v78
    %v80 = vadd.f32 %v76, %v79
    %s81 = sld [smem:[#allocation2 + $0xf]]
    %v82 = vstv %s81
    %v83 = vadd.f32 %v80, %v82
    %v84 = vtanh.pop %v83
    %s85 = sld [smem:[#allocation2 + $0x4]]
    %v86 = vstv %s85
    %v87 = vmul.f32 %v39, %v86
    %s88 = sld [smem:[#allocation2 + $0xa]]
    %v89 = vstv %s88
    %v90 = vmul.f32 %v40, %v89
    %v91 = vadd.f32 %v87, %v90
    %s92 = sld [smem:[#allocation2 + $0x10]]
    %v93 = vstv %s92
    %v94 = vadd.f32 %v91, %v93
    %v95 = vtanh.pop %v94
    %s96 = sld [smem:[#allocation2 + $0x5]]
    %v97 = vstv %s96
    %v98 = vmul.f32 %v39, %v97
    %s99 = sld [smem:[#allocation2 + $0xb]]
    %v100 = vstv %s99
    %v101 = vmul.f32 %v40, %v100
    %v102 = vadd.f32 %v98, %v101
    %s103 = sld [smem:[#allocation2 + $0x11]]
    %v104 = vstv %s103
    %v105 = vadd.f32 %v102, %v104
    %v106 = vtanh.pop %v105
    %s107 = sld [smem:[#allocation2 + $0x12]]
    %v108 = vstv %s107
    %v109 = vmul.f32 %v51, %v108
    %s110 = sld [smem:[#allocation2 + $0x18]]
    %v111 = vstv %s110
    %v112 = vmul.f32 %v62, %v111
    %v113 = vadd.f32 %v109, %v112
    %s114 = sld [smem:[#allocation2 + $0x1e]]
    %v115 = vstv %s114
    %v116 = vmul.f32 %v73, %v115
    %v117 = vadd.f32 %v113, %v116
    %s118 = sld [smem:[#allocation2 + $0x24]]
    %v119 = vstv %s118
    %v120 = vmul.f32 %v84, %v119
    %v121 = vadd.f32 %v117, %v120
    %s122 = sld [smem:[#allocation2 + $0x2a]]
    %v123 = vstv %s122
    %v124 = vmul.f32 %v95, %v123
    %v125 = vadd.f32 %v121, %v124
    %s126 = sld [smem:[#allocation2 + $0x30]]
    %v127 = vstv %s126
    %v128 = vmul.f32 %v106, %v127
    %v129 = vadd.f32 %v125, %v128
    %s130 = sld [smem:[#allocation2 + $0x36]]
    %v131 = vstv %s130
    %v132 = vadd.f32 %v129, %v131
    %v133 = vtanh.pop %v132
    %s134 = sld [smem:[#allocation2 + $0x13]]
    %v135 = vstv %s134
    %v136 = vmul.f32 %v51, %v135
    %s137 = sld [smem:[#allocation2 + $0x19]]
    %v138 = vstv %s137
    %v139 = vmul.f32 %v62, %v138
    %v140 = vadd.f32 %v136, %v139
    %s141 = sld [smem:[#allocation2 + $0x1f]]
    %v142 = vstv %s141
    %v143 = vmul.f32 %v73, %v142
    %v144 = vadd.f32 %v140, %v143
    %s145 = sld [smem:[#allocation2 + $0x25]]
    %v146 = vstv %s145
    %v147 = vmul.f32 %v84, %v146
    %v148 = vadd.f32 %v144, %v147
    %s149 = sld [smem:[#allocation2 + $0x2b]]
    %v150 = vstv %s149
    %v151 = vmul.f32 %v95, %v150
    %v152 = vadd.f32 %v148, %v151
    %s153 = sld [smem:[#allocation2 + $0x31]]
    %v154 = vstv %s153
    %v155 = vmul.f32 %v106, %v154
    %v156 = vadd.f32 %v152, %v155
    %s157 = sld [smem:[#allocation2 + $0x37]]
    %v158 = vstv %s157
    %v159 = vadd.f32 %v156, %v158
    %v160 = vtanh.pop %v159
    %s161 = sld [smem:[#allocation2 + $0x14]]
    %v162 = vstv %s161
    %v163 = vmul.f32 %v51, %v162
    %s164 = sld [smem:[#allocation2 + $0x1a]]
    %v165 = vstv %s164
    %v166 = vmul.f32 %v62, %v165
    %v167 = vadd.f32 %v163, %v166
    %s168 = sld [smem:[#allocation2 + $0x20]]
    %v169 = vstv %s168
    %v170 = vmul.f32 %v73, %v169
    %v171 = vadd.f32 %v167, %v170
    %s172 = sld [smem:[#allocation2 + $0x26]]
    %v173 = vstv %s172
    %v174 = vmul.f32 %v84, %v173
    %v175 = vadd.f32 %v171, %v174
    %s176 = sld [smem:[#allocation2 + $0x2c]]
    %v177 = vstv %s176
    %v178 = vmul.f32 %v95, %v177
    %v179 = vadd.f32 %v175, %v178
    %s180 = sld [smem:[#allocation2 + $0x32]]
    %v181 = vstv %s180
    %v182 = vmul.f32 %v106, %v181
    %v183 = vadd.f32 %v179, %v182
    %s184 = sld [smem:[#allocation2 + $0x38]]
    %v185 = vstv %s184
    %v186 = vadd.f32 %v183, %v185
    %v187 = vtanh.pop %v186
    %s188 = sld [smem:[#allocation2 + $0x15]]
    %v189 = vstv %s188
    %v190 = vmul.f32 %v51, %v189
    %s191 = sld [smem:[#allocation2 + $0x1b]]
    %v192 = vstv %s191
    %v193 = vmul.f32 %v62, %v192
    %v194 = vadd.f32 %v190, %v193
    %s195 = sld [smem:[#allocation2 + $0x21]]
    %v196 = vstv %s195
    %v197 = vmul.f32 %v73, %v196
    %v198 = vadd.f32 %v194, %v197
    %s199 = sld [smem:[#allocation2 + $0x27]]
    %v200 = vstv %s199
    %v201 = vmul.f32 %v84, %v200
    %v202 = vadd.f32 %v198, %v201
    %s203 = sld [smem:[#allocation2 + $0x2d]]
    %v204 = vstv %s203
    %v205 = vmul.f32 %v95, %v204
    %v206 = vadd.f32 %v202, %v205
    %s207 = sld [smem:[#allocation2 + $0x33]]
    %v208 = vstv %s207
    %v209 = vmul.f32 %v106, %v208
    %v210 = vadd.f32 %v206, %v209
    %s211 = sld [smem:[#allocation2 + $0x39]]
    %v212 = vstv %s211
    %v213 = vadd.f32 %v210, %v212
    %v214 = vtanh.pop %v213
    %s215 = sld [smem:[#allocation2 + $0x16]]
    %v216 = vstv %s215
    %v217 = vmul.f32 %v51, %v216
    %s218 = sld [smem:[#allocation2 + $0x1c]]
    %v219 = vstv %s218
    %v220 = vmul.f32 %v62, %v219
    %v221 = vadd.f32 %v217, %v220
    %s222 = sld [smem:[#allocation2 + $0x22]]
    %v223 = vstv %s222
    %v224 = vmul.f32 %v73, %v223
    %v225 = vadd.f32 %v221, %v224
    %s226 = sld [smem:[#allocation2 + $0x28]]
    %v227 = vstv %s226
    %v228 = vmul.f32 %v84, %v227
    %v229 = vadd.f32 %v225, %v228
    %s230 = sld [smem:[#allocation2 + $0x2e]]
    %v231 = vstv %s230
    %v232 = vmul.f32 %v95, %v231
    %v233 = vadd.f32 %v229, %v232
    %s234 = sld [smem:[#allocation2 + $0x34]]
    %v235 = vstv %s234
    %v236 = vmul.f32 %v106, %v235
    %v237 = vadd.f32 %v233, %v236
    %s238 = sld [smem:[#allocation2 + $0x3a]]
    %v239 = vstv %s238
    %v240 = vadd.f32 %v237, %v239
    %v241 = vtanh.pop %v240
    %s242 = sld [smem:[#allocation2 + $0x17]]
    %v243 = vstv %s242
    %v244 = vmul.f32 %v51, %v243
    %s245 = sld [smem:[#allocation2 + $0x1d]]
    %v246 = vstv %s245
    %v247 = vmul.f32 %v62, %v246
    %v248 = vadd.f32 %v244, %v247
    %s249 = sld [smem:[#allocation2 + $0x23]]
    %v250 = vstv %s249
    %v251 = vmul.f32 %v73, %v250
    %v252 = vadd.f32 %v248, %v251
    %s253 = sld [smem:[#allocation2 + $0x29]]
    %v254 = vstv %s253
    %v255 = vmul.f32 %v84, %v254
    %v256 = vadd.f32 %v252, %v255
    %s257 = sld [smem:[#allocation2 + $0x2f]]
    %v258 = vstv %s257
    %v259 = vmul.f32 %v95, %v258
    %v260 = vadd.f32 %v256, %v259
    %s261 = sld [smem:[#allocation2 + $0x35]]
    %v262 = vstv %s261
    %v263 = vmul.f32 %v106, %v262
    %v264 = vadd.f32 %v260, %v263
    %s265 = sld [smem:[#allocation2 + $0x3b]]
    %v266 = vstv %s265
    %v267 = vadd.f32 %v264, %v266
    %v268 = vtanh.pop %v267
    %s269 = sld [smem:[#allocation2 + $0x3c]]
    %v270 = vstv %s269
    %v271 = vmul.f32 %v133, %v270
    %s272 = sld [smem:[#allocation2 + $0x3e]]
    %v273 = vstv %s272
    %v274 = vmul.f32 %v160, %v273
    %v275 = vadd.f32 %v271, %v274
    %s276 = sld [smem:[#allocation2 + $0x40]]
    %v277 = vstv %s276
    %v278 = vmul.f32 %v187, %v277
    %v279 = vadd.f32 %v275, %v278
    %s280 = sld [smem:[#allocation2 + $0x42]]
    %v281 = vstv %s280
    %v282 = vmul.f32 %v214, %v281
    %v283 = vadd.f32 %v279, %v282
    %s284 = sld [smem:[#allocation2 + $0x44]]
    %v285 = vstv %s284
    %v286 = vmul.f32 %v241, %v285
    %v287 = vadd.f32 %v283, %v286
    %s288 = sld [smem:[#allocation2 + $0x46]]
    %v289 = vstv %s288
    %v290 = vmul.f32 %v268, %v289
    %v291 = vadd.f32 %v287, %v290
    %s292 = sld [smem:[#allocation2 + $0x48]]
    %v293 = vstv %s292
    %v294 = vadd.f32 %v291, %v293
    %s295 = sld [smem:[#allocation2 + $0x3d]]
    %v296 = vstv %s295
    %v297 = vmul.f32 %v133, %v296
    %s298 = sld [smem:[#allocation2 + $0x3f]]
    %v299 = vstv %s298
    %v300 = vmul.f32 %v160, %v299
    %v301 = vadd.f32 %v297, %v300
    %s302 = sld [smem:[#allocation2 + $0x41]]
    %v303 = vstv %s302
    %v304 = vmul.f32 %v187, %v303
    %v305 = vadd.f32 %v301, %v304
    %s306 = sld [smem:[#allocation2 + $0x43]]
    %v307 = vstv %s306
    %v308 = vmul.f32 %v214, %v307
    %v309 = vadd.f32 %v305, %v308
    %s310 = sld [smem:[#allocation2 + $0x45]]
    %v311 = vstv %s310
    %v312 = vmul.f32 %v241, %v311
    %v313 = vadd.f32 %v309, %v312
    %s314 = sld [smem:[#allocation2 + $0x47]]
    %v315 = vstv %s314
    %v316 = vmul.f32 %v268, %v315
    %v317 = vadd.f32 %v313, %v316
    %s318 = sld [smem:[#allocation2 + $0x49]]
    %v319 = vstv %s318
    %v320 = vadd.f32 %v317, %v319
    %321 = vst [vmem:[#allocation7] sm:$0x1] %v294
    %322 = vst [vmem:[#allocation7 + $0x1] sm:$0x1] %v320
    // Predicated region
    $region18: #{tpu_custom_call.1} parent=1 // pred_check
      _
    $region19: #{tpu_custom_call.1} parent=1 // pred_check_branch
      %324 = sbr.rel (0) target = $region21
    $region20: #{tpu_custom_call.1} parent=1 // pred_region
      %326 = vsyncadd [#allocation4], 0
      %s328 = sshll.u32 [#allocation7], 4
      %s329 = int_to_ptr.vmem [resolvable:$true] %s328
      %s330 = sshll.u32 %s2, 4
      %s331 = int_to_ptr.hbm [resolvable:$true] %s330
      %333 = dma.vmem_to_hbm [thread:$0]  %s329, 32, %s331, [#allocation4]
    $region21: #{tpu_custom_call.1} parent=1 // pred_fallthru
      _
    // Predicated region
    $region22: #{tpu_custom_call.1} parent=1 // pred_check
      _
    $region23: #{tpu_custom_call.1} parent=1 // pred_check_branch
      %335 = sbr.rel (0) target = $region25
    $region24: #{tpu_custom_call.1} parent=1 // pred_region
      %337 = dma.done [#allocation4], 32
    $region25: #{tpu_custom_call.1} parent=1 // pred_fallthru
      _
    %338 = vsyncpa [#allocation3], 1
    %339 = vsyncpa [#allocation4], 1
    %340 = vsyncpa [#allocation5], 1

</llo_original>
